<compile_context>
chip_gen: v7x
topology: tpu7x:2x2x1
jax: 0.10.0
libtpu: 0.0.40
codegen_flags: <defaults>
</compile_context>

<pallas_src>
import functools

import jax
import jax.numpy as jnp
from jax.experimental import pallas as pl
from jax.experimental.pallas import tpu as pltpu


def lstm_model_kernel(lens_ref, x_ref, w_ih0_ref, w_ihr_ref, w_hh_ref, b_ref,
                      w_lin_ref, b_lin_ref, out_ref,
                      h_scr, c_scr, last_scr):
    """One grid step == one batch tile of TILE_B rows.

    lens_ref:  (TILE_B, 1)  int32   number of non-padding tokens per row
    x_ref:     (L, TILE_B, E)       time-major embedded tokens (f32)
    w_ih0_ref: (E, 4H)              layer-0 input weights (i|f|g|o)
    w_ihr_ref: (max(n_layer-1,1), H, 4H)  input weights for layers 1..n-1
    w_hh_ref:  (n_layer, H, 4H)     recurrent weights
    b_ref:     (n_layer, 1, 4H)     combined bias (b_ih + b_hh)
    w_lin_ref: (H, T), b_lin_ref: (1, T)
    out_ref:   (TILE_B, T)
    scratch:   h_scr/c_scr (n_layer, TILE_B, H) f32, last_scr (TILE_B, H) f32
    """
    L = x_ref.shape[0]
    n_layer = w_hh_ref.shape[0]
    H = w_hh_ref.shape[1]

    # Re-initialize per-tile state (scratch persists across grid steps).
    h_scr[...] = jnp.zeros_like(h_scr)
    c_scr[...] = jnp.zeros_like(c_scr)
    last_scr[...] = jnp.zeros_like(last_scr)

    t_last = lens_ref[...] - 1                    # (TILE_B, 1) int32

    def sigmoid(z):
        return 1.0 / (1.0 + jnp.exp(-z))

    def step(t, carry):
        inp = x_ref[t]                            # (TILE_B, E)
        for layer in range(n_layer):              # static unroll over layers
            w_ih = w_ih0_ref[...] if layer == 0 else w_ihr_ref[layer - 1]
            gates = (
                jnp.dot(inp, w_ih, preferred_element_type=jnp.float32)
                + jnp.dot(h_scr[layer], w_hh_ref[layer],
                          preferred_element_type=jnp.float32)
                + b_ref[layer]
            )                                     # (TILE_B, 4H)
            i_g = sigmoid(gates[:, 0:H])
            f_g = sigmoid(gates[:, H:2 * H])
            g_g = jnp.tanh(gates[:, 2 * H:3 * H])
            o_g = sigmoid(gates[:, 3 * H:4 * H])
            c_new = f_g * c_scr[layer] + i_g * g_g
            h_new = o_g * jnp.tanh(c_new)
            c_scr[layer] = c_new
            h_scr[layer] = h_new
            inp = h_new                           # feed next layer
        # Capture top-layer hidden at each row's last valid timestep.
        sel = (t_last == t)                       # (TILE_B, 1) bool
        last_scr[...] = jnp.where(sel, inp, last_scr[...])
        return carry

    jax.lax.fori_loop(0, L, step, 0)

    out = (jnp.dot(last_scr[...], w_lin_ref[...],
                   preferred_element_type=jnp.float32) + b_lin_ref[...])
    out_ref[...] = out


def lstm_model_forward(token_ids, params, *, padding_id, tile_b=8):
    """token_ids: (B, L) int32 -> logits (B, T) f32."""
    emb_table = params["embedding"]               # (V, E)
    B, L = token_ids.shape
    E = emb_table.shape[1]
    n_layer, H, H4 = params["w_hh"].shape
    T = params["w_lin"].shape[1]

    # lens = max_len - #padding tokens (same formula as cal_seq_len).
    lens = (L - jnp.sum(token_ids == padding_id, axis=-1)).astype(jnp.int32)
    lens = lens.reshape(B, 1)

    x = jnp.take(emb_table, token_ids, axis=0)    # (B, L, E)  glue gather
    x = jnp.transpose(x, (1, 0, 2))               # (L, B, E)  time-major

    tile_b = min(tile_b, B)
    assert B % tile_b == 0, "pad batch to a multiple of tile_b"
    assert tile_b % 8 == 0 or tile_b == B, "tile_b must be a sublane multiple"
    grid = (B // tile_b,)

    cost = pl.CostEstimate(
        flops=2 * B * L * n_layer * (E * H4 + H * H4) + 2 * B * H * T,
        transcendentals=B * L * n_layer * H4,
        bytes_accessed=(x.size + params["w_ih0"].size + params["w_ihr"].size
                        + params["w_hh"].size + params["b"].size
                        + params["w_lin"].size + params["b_lin"].size
                        + B * T) * 4,
    )

    return pl.pallas_call(
        lstm_model_kernel,
        out_shape=jax.ShapeDtypeStruct((B, T), jnp.float32),
        grid_spec=pltpu.PrefetchScalarGridSpec(
            num_scalar_prefetch=0,
            grid=grid,
            in_specs=[
                pl.BlockSpec((tile_b, 1), lambda b: (b, 0)),            # lens
                pl.BlockSpec((L, tile_b, E), lambda b: (0, b, 0)),      # x
                pl.BlockSpec((E, H4), lambda b: (0, 0)),                # w_ih0
                pl.BlockSpec((max(n_layer - 1, 1), H, H4),
                             lambda b: (0, 0, 0)),                      # w_ihr
                pl.BlockSpec((n_layer, H, H4), lambda b: (0, 0, 0)),    # w_hh
                pl.BlockSpec((n_layer, 1, H4), lambda b: (0, 0, 0)),    # b
                pl.BlockSpec((H, T), lambda b: (0, 0)),                 # w_lin
                pl.BlockSpec((1, T), lambda b: (0, 0)),                 # b_lin
            ],
            out_specs=pl.BlockSpec((tile_b, T), lambda b: (b, 0)),
            scratch_shapes=[
                pltpu.VMEM((n_layer, tile_b, H), jnp.float32),   # h state
                pltpu.VMEM((n_layer, tile_b, H), jnp.float32),   # c state
                pltpu.VMEM((tile_b, H), jnp.float32),            # last hidden
            ],
        ),
        compiler_params=pltpu.CompilerParams(
            dimension_semantics=("parallel",)),
        cost_estimate=cost,
    )(lens, x, params["w_ih0"], params["w_ihr"], params["w_hh"], params["b"],
      params["w_lin"], params["b_lin"])


def make_params(key, vocab, embed_dim, hidden_dim, n_layer, tag_dim, padding_id):
    ks = jax.random.split(key, 7)
    nrm = lambda k, s: 0.1 * jax.random.normal(k, s, jnp.float32)
    embedding = nrm(ks[0], (vocab, embed_dim))
    embedding = embedding.at[padding_id].set(0.0)   # nn.Embedding(padding_idx=...)
    w_ih0 = nrm(ks[1], (embed_dim, 4 * hidden_dim))
    w_ihr = nrm(ks[2], (max(n_layer - 1, 1), hidden_dim, 4 * hidden_dim))
    if n_layer == 1:
        w_ihr = jnp.zeros_like(w_ihr)               # dummy, never read
    w_hh = nrm(ks[3], (n_layer, hidden_dim, 4 * hidden_dim))
    b = nrm(ks[4], (n_layer, 1, 4 * hidden_dim))    # b_ih + b_hh combined
    w_lin = nrm(ks[5], (hidden_dim, tag_dim))
    b_lin = nrm(ks[6], (1, tag_dim))
    return dict(embedding=embedding, w_ih0=w_ih0, w_ihr=w_ihr, w_hh=w_hh,
                b=b, w_lin=w_lin, b_lin=b_lin)


def reference_forward(token_ids, params, padding_id):
    """Pure-JAX reference with identical semantics (sanity check)."""
    x = jnp.take(params["embedding"], token_ids, axis=0)   # (B, L, E)
    B, L, _ = x.shape
    n_layer, H, _ = params["w_hh"].shape
    lens = L - jnp.sum(token_ids == padding_id, axis=-1)

    sigmoid = lambda z: 1.0 / (1.0 + jnp.exp(-z))
    seq = x
    for layer in range(n_layer):
        w_ih = params["w_ih0"] if layer == 0 else params["w_ihr"][layer - 1]
        w_hh = params["w_hh"][layer]
        b = params["b"][layer, 0]
        h = jnp.zeros((B, H), jnp.float32)
        c = jnp.zeros((B, H), jnp.float32)
        outs = []
        for t in range(L):
            gates = seq[:, t] @ w_ih + h @ w_hh + b
            i_g = sigmoid(gates[:, 0:H])
            f_g = sigmoid(gates[:, H:2 * H])
            g_g = jnp.tanh(gates[:, 2 * H:3 * H])
            o_g = sigmoid(gates[:, 3 * H:4 * H])
            c = f_g * c + i_g * g_g
            h = o_g * jnp.tanh(c)
            outs.append(h)
        seq = jnp.stack(outs, axis=1)                        # (B, L, H)
    last = seq[jnp.arange(B), lens - 1]                      # (B, H)
    return last @ params["w_lin"] + params["b_lin"]


if __name__ == "__main__":
    # Small config consistent with the module's forward.
    vocab, embed_dim, hidden_dim, n_layer, tag_dim, padding_id = 32, 32, 32, 2, 8, 0
    batch, max_seq_len, tile_b = 16, 8, 8

    key = jax.random.PRNGKey(0)
    k_params, k_tokens = jax.random.split(key)
    params = make_params(k_params, vocab, embed_dim, hidden_dim, n_layer,
                         tag_dim, padding_id)
    token_ids = jax.random.randint(k_tokens, (batch, max_seq_len), 1, vocab,
                                   jnp.int32)
    # Add trailing padding on a couple of rows so the lens-1 gather is exercised.
    token_ids = token_ids.at[0, 5:].set(padding_id)
    token_ids = token_ids.at[3, 7:].set(padding_id)

    fwd = functools.partial(lstm_model_forward, padding_id=padding_id,
                            tile_b=tile_b)
    out = fwd(token_ids, params)
    out = jax.block_until_ready(out)

    ref = reference_forward(token_ids, params, padding_id)
    assert out.shape == (batch, tag_dim), out.shape
    assert jnp.allclose(out, ref, atol=1e-5, rtol=1e-5), (out, ref)
    print("KERNEL_OK")
</pallas_src>

<mosaic_0001>
module attributes {stable_mosaic.version = 11 : i64} {
  func.func @lstm_model_kernel(%arg0: i32, %arg1: memref<8x1xi32, #tpu.memory_space<vmem>>, %arg2: memref<8x8x32xf32, #tpu.memory_space<vmem>>, %arg3: memref<32x128xf32, #tpu.memory_space<vmem>>, %arg4: memref<1x32x128xf32, #tpu.memory_space<vmem>>, %arg5: memref<2x32x128xf32, #tpu.memory_space<vmem>>, %arg6: memref<2x1x128xf32, #tpu.memory_space<vmem>>, %arg7: memref<32x8xf32, #tpu.memory_space<vmem>>, %arg8: memref<1x8xf32, #tpu.memory_space<vmem>>, %arg9: memref<8x8xf32, #tpu.memory_space<vmem>>, %arg10: memref<2x8x32xf32, #tpu.memory_space<vmem>>, %arg11: memref<2x8x32xf32, #tpu.memory_space<vmem>>, %arg12: memref<8x32xf32, #tpu.memory_space<vmem>>) attributes {dimension_semantics = [#tpu.dimension_semantics<parallel>], iteration_bounds = array<i64: 2>, scalar_prefetch = 0 : i64, scratch_operands = 3 : i64, tpu.core_type = #tpu.core_type<tc>, window_params = [{transform_indices = @transform_0, window_bounds = array<i64: 8, 1>}, {transform_indices = @transform_1, window_bounds = array<i64: 8, 8, 32>}, {pipeline_mode = #tpu.pipeline_mode<synchronous>, transform_indices = @transform_2, window_bounds = array<i64: 32, 128>}, {pipeline_mode = #tpu.pipeline_mode<synchronous>, transform_indices = @transform_3, window_bounds = array<i64: 1, 32, 128>}, {pipeline_mode = #tpu.pipeline_mode<synchronous>, transform_indices = @transform_4, window_bounds = array<i64: 2, 32, 128>}, {pipeline_mode = #tpu.pipeline_mode<synchronous>, transform_indices = @transform_5, window_bounds = array<i64: 2, 1, 128>}, {pipeline_mode = #tpu.pipeline_mode<synchronous>, transform_indices = @transform_6, window_bounds = array<i64: 32, 8>}, {pipeline_mode = #tpu.pipeline_mode<synchronous>, transform_indices = @transform_7, window_bounds = array<i64: 1, 8>}, {transform_indices = @transform_8, window_bounds = array<i64: 8, 8>}]} {
    %cst = arith.constant 0.000000e+00 : f32
    %0 = vector.broadcast %cst : f32 to vector<2x8x32xf32>
    %c0 = arith.constant 0 : index
    %c0_0 = arith.constant 0 : index
    %c0_1 = arith.constant 0 : index
    %1 = vector.load %arg10[%c0, %c0_0, %c0_1] : memref<2x8x32xf32, #tpu.memory_space<vmem>>, vector<2x8x32xf32>
    tpu.vector_store %arg10[%c0, %c0_0, %c0_1], %0 {strides = array<i32>} : memref<2x8x32xf32, #tpu.memory_space<vmem>>, vector<2x8x32xf32>,
    %cst_2 = arith.constant 0.000000e+00 : f32
    %2 = vector.broadcast %cst_2 : f32 to vector<2x8x32xf32>
    %c0_3 = arith.constant 0 : index
    %c0_4 = arith.constant 0 : index
    %c0_5 = arith.constant 0 : index
    %3 = vector.load %arg11[%c0_3, %c0_4, %c0_5] : memref<2x8x32xf32, #tpu.memory_space<vmem>>, vector<2x8x32xf32>
    tpu.vector_store %arg11[%c0_3, %c0_4, %c0_5], %2 {strides = array<i32>} : memref<2x8x32xf32, #tpu.memory_space<vmem>>, vector<2x8x32xf32>,
    %cst_6 = arith.constant 0.000000e+00 : f32
    %4 = vector.broadcast %cst_6 : f32 to vector<8x32xf32>
    %c0_7 = arith.constant 0 : index
    %c0_8 = arith.constant 0 : index
    %5 = vector.load %arg12[%c0_7, %c0_8] : memref<8x32xf32, #tpu.memory_space<vmem>>, vector<8x32xf32>
    tpu.vector_store %arg12[%c0_7, %c0_8], %4 {strides = array<i32>} : memref<8x32xf32, #tpu.memory_space<vmem>>, vector<8x32xf32>,
    %c0_9 = arith.constant 0 : index
    %c0_10 = arith.constant 0 : index
    %6 = vector.load %arg1[%c0_9, %c0_10] : memref<8x1xi32, #tpu.memory_space<vmem>>, vector<8x1xi32>
    %c1_i32 = arith.constant 1 : i32
    %7 = vector.broadcast %c1_i32 : i32 to vector<8x1xi32>
    %8 = arith.subi %6, %7 : vector<8x1xi32>
    %c0_i32 = arith.constant 0 : i32
    %c8_i32 = arith.constant 8 : i32
    %9 = arith.addi %c0_i32, %c8_i32 : i32
    %c1_i32_11 = arith.constant 1 : i32
    scf.for %arg13 = %c0_i32 to %9 step %c1_i32_11  : i32 {
      %17 = arith.index_cast %arg13 : i32 to index
      %c0_22 = arith.constant 0 : index
      %c0_23 = arith.constant 0 : index
      %18 = vector.load %arg2[%17, %c0_22, %c0_23] : memref<8x8x32xf32, #tpu.memory_space<vmem>>, vector<1x8x32xf32>
      %19 = vector.shape_cast %18 : vector<1x8x32xf32> to vector<8x32xf32>
      %c0_24 = arith.constant 0 : index
      %c0_25 = arith.constant 0 : index
      %20 = vector.load %arg3[%c0_24, %c0_25] : memref<32x128xf32, #tpu.memory_space<vmem>>, vector<32x128xf32>
      %cst_26 = arith.constant dense<0.000000e+00> : vector<8x128xf32>
      %21 = tpu.matmul %19, %20, %cst_26 {dimension_numbers = #tpu.dot_dimension_numbers<[1], [0], [0], [1], [0, 0, 1, 1], [], []>} : vector<8x32xf32>, vector<32x128xf32>, vector<8x128xf32> -> vector<8x128xf32>
      %c0_27 = arith.constant 0 : index
      %c0_28 = arith.constant 0 : index
      %c0_29 = arith.constant 0 : index
      %22 = vector.load %arg10[%c0_27, %c0_28, %c0_29] : memref<2x8x32xf32, #tpu.memory_space<vmem>>, vector<1x8x32xf32>
      %23 = vector.shape_cast %22 : vector<1x8x32xf32> to vector<8x32xf32>
      %c0_30 = arith.constant 0 : index
      %c0_31 = arith.constant 0 : index
      %c0_32 = arith.constant 0 : index
      %24 = vector.load %arg5[%c0_30, %c0_31, %c0_32] : memref<2x32x128xf32, #tpu.memory_space<vmem>>, vector<1x32x128xf32>
      %25 = vector.shape_cast %24 : vector<1x32x128xf32> to vector<32x128xf32>
      %cst_33 = arith.constant dense<0.000000e+00> : vector<8x128xf32>
      %26 = tpu.matmul %23, %25, %cst_33 {dimension_numbers = #tpu.dot_dimension_numbers<[1], [0], [0], [1], [0, 0, 1, 1], [], []>} : vector<8x32xf32>, vector<32x128xf32>, vector<8x128xf32> -> vector<8x128xf32>
      %27 = arith.addf %21, %26 : vector<8x128xf32>
      %c0_34 = arith.constant 0 : index
      %c0_35 = arith.constant 0 : index
      %c0_36 = arith.constant 0 : index
      %28 = vector.load %arg6[%c0_34, %c0_35, %c0_36] : memref<2x1x128xf32, #tpu.memory_space<vmem>>, vector<1x1x128xf32>
      %29 = vector.shape_cast %28 : vector<1x1x128xf32> to vector<1x128xf32>
      %30 = vector.broadcast %29 : vector<1x128xf32> to vector<8x128xf32>
      %31 = arith.addf %27, %30 : vector<8x128xf32>
      %32 = vector.extract_strided_slice %31 {offsets = [0, 0], sizes = [8, 32], strides = [1, 1]} : vector<8x128xf32> to vector<8x32xf32>
      %cst_37 = arith.constant 0.000000e+00 : f32
      %33 = vector.broadcast %cst_37 : f32 to vector<8x32xf32>
      %34 = arith.subf %33, %32 : vector<8x32xf32>
      %35 = math.exp %34 : vector<8x32xf32>
      %cst_38 = arith.constant 1.000000e+00 : f32
      %36 = vector.broadcast %cst_38 : f32 to vector<8x32xf32>
      %37 = arith.addf %36, %35 : vector<8x32xf32>
      %cst_39 = arith.constant 1.000000e+00 : f32
      %38 = vector.broadcast %cst_39 : f32 to vector<8x32xf32>
      %39 = arith.divf %38, %37 : vector<8x32xf32>
      %40 = vector.extract_strided_slice %31 {offsets = [0, 32], sizes = [8, 32], strides = [1, 1]} : vector<8x128xf32> to vector<8x32xf32>
      %cst_40 = arith.constant 0.000000e+00 : f32
      %41 = vector.broadcast %cst_40 : f32 to vector<8x32xf32>
      %42 = arith.subf %41, %40 : vector<8x32xf32>
      %43 = math.exp %42 : vector<8x32xf32>
      %cst_41 = arith.constant 1.000000e+00 : f32
      %44 = vector.broadcast %cst_41 : f32 to vector<8x32xf32>
      %45 = arith.addf %44, %43 : vector<8x32xf32>
      %cst_42 = arith.constant 1.000000e+00 : f32
      %46 = vector.broadcast %cst_42 : f32 to vector<8x32xf32>
      %47 = arith.divf %46, %45 : vector<8x32xf32>
      %48 = vector.extract_strided_slice %31 {offsets = [0, 64], sizes = [8, 32], strides = [1, 1]} : vector<8x128xf32> to vector<8x32xf32>
      %49 = math.tanh %48 : vector<8x32xf32>
      %50 = vector.extract_strided_slice %31 {offsets = [0, 96], sizes = [8, 32], strides = [1, 1]} : vector<8x128xf32> to vector<8x32xf32>
      %cst_43 = arith.constant 0.000000e+00 : f32
      %51 = vector.broadcast %cst_43 : f32 to vector<8x32xf32>
      %52 = arith.subf %51, %50 : vector<8x32xf32>
      %53 = math.exp %52 : vector<8x32xf32>
      %cst_44 = arith.constant 1.000000e+00 : f32
      %54 = vector.broadcast %cst_44 : f32 to vector<8x32xf32>
      %55 = arith.addf %54, %53 : vector<8x32xf32>
      %cst_45 = arith.constant 1.000000e+00 : f32
      %56 = vector.broadcast %cst_45 : f32 to vector<8x32xf32>
      %57 = arith.divf %56, %55 : vector<8x32xf32>
      %c0_46 = arith.constant 0 : index
      %c0_47 = arith.constant 0 : index
      %c0_48 = arith.constant 0 : index
      %58 = vector.load %arg11[%c0_46, %c0_47, %c0_48] : memref<2x8x32xf32, #tpu.memory_space<vmem>>, vector<1x8x32xf32>
      %59 = vector.shape_cast %58 : vector<1x8x32xf32> to vector<8x32xf32>
      %60 = arith.mulf %47, %59 : vector<8x32xf32>
      %61 = arith.mulf %39, %49 : vector<8x32xf32>
      %62 = arith.addf %60, %61 : vector<8x32xf32>
      %63 = math.tanh %62 : vector<8x32xf32>
      %64 = arith.mulf %57, %63 : vector<8x32xf32>
      %c0_49 = arith.constant 0 : index
      %c0_50 = arith.constant 0 : index
      %c0_51 = arith.constant 0 : index
      %65 = vector.load %arg11[%c0_49, %c0_50, %c0_51] : memref<2x8x32xf32, #tpu.memory_space<vmem>>, vector<1x8x32xf32>
      %66 = vector.shape_cast %65 : vector<1x8x32xf32> to vector<8x32xf32>
      %67 = vector.shape_cast %62 : vector<8x32xf32> to vector<1x8x32xf32>
      tpu.vector_store %arg11[%c0_49, %c0_50, %c0_51], %67 {strides = array<i32>} : memref<2x8x32xf32, #tpu.memory_space<vmem>>, vector<1x8x32xf32>,
      %c0_52 = arith.constant 0 : index
      %c0_53 = arith.constant 0 : index
      %c0_54 = arith.constant 0 : index
      %68 = vector.load %arg10[%c0_52, %c0_53, %c0_54] : memref<2x8x32xf32, #tpu.memory_space<vmem>>, vector<1x8x32xf32>
      %69 = vector.shape_cast %68 : vector<1x8x32xf32> to vector<8x32xf32>
      %70 = vector.shape_cast %64 : vector<8x32xf32> to vector<1x8x32xf32>
      tpu.vector_store %arg10[%c0_52, %c0_53, %c0_54], %70 {strides = array<i32>} : memref<2x8x32xf32, #tpu.memory_space<vmem>>, vector<1x8x32xf32>,
      %c0_55 = arith.constant 0 : index
      %c0_56 = arith.constant 0 : index
      %c0_57 = arith.constant 0 : index
      %71 = vector.load %arg4[%c0_55, %c0_56, %c0_57] : memref<1x32x128xf32, #tpu.memory_space<vmem>>, vector<1x32x128xf32>
      %72 = vector.shape_cast %71 : vector<1x32x128xf32> to vector<32x128xf32>
      %cst_58 = arith.constant dense<0.000000e+00> : vector<8x128xf32>
      %73 = tpu.matmul %64, %72, %cst_58 {dimension_numbers = #tpu.dot_dimension_numbers<[1], [0], [0], [1], [0, 0, 1, 1], [], []>} : vector<8x32xf32>, vector<32x128xf32>, vector<8x128xf32> -> vector<8x128xf32>
      %c1 = arith.constant 1 : index
      %c0_59 = arith.constant 0 : index
      %c0_60 = arith.constant 0 : index
      %74 = vector.load %arg10[%c1, %c0_59, %c0_60] : memref<2x8x32xf32, #tpu.memory_space<vmem>>, vector<1x8x32xf32>
      %75 = vector.shape_cast %74 : vector<1x8x32xf32> to vector<8x32xf32>
      %c1_61 = arith.constant 1 : index
      %c0_62 = arith.constant 0 : index
      %c0_63 = arith.constant 0 : index
      %76 = vector.load %arg5[%c1_61, %c0_62, %c0_63] : memref<2x32x128xf32, #tpu.memory_space<vmem>>, vector<1x32x128xf32>
      %77 = vector.shape_cast %76 : vector<1x32x128xf32> to vector<32x128xf32>
      %cst_64 = arith.constant dense<0.000000e+00> : vector<8x128xf32>
      %78 = tpu.matmul %75, %77, %cst_64 {dimension_numbers = #tpu.dot_dimension_numbers<[1], [0], [0], [1], [0, 0, 1, 1], [], []>} : vector<8x32xf32>, vector<32x128xf32>, vector<8x128xf32> -> vector<8x128xf32>
      %79 = arith.addf %73, %78 : vector<8x128xf32>
      %c1_65 = arith.constant 1 : index
      %c0_66 = arith.constant 0 : index
      %c0_67 = arith.constant 0 : index
      %80 = vector.load %arg6[%c1_65, %c0_66, %c0_67] : memref<2x1x128xf32, #tpu.memory_space<vmem>>, vector<1x1x128xf32>
      %81 = vector.shape_cast %80 : vector<1x1x128xf32> to vector<1x128xf32>
      %82 = vector.broadcast %81 : vector<1x128xf32> to vector<8x128xf32>
      %83 = arith.addf %79, %82 : vector<8x128xf32>
      %84 = vector.extract_strided_slice %83 {offsets = [0, 0], sizes = [8, 32], strides = [1, 1]} : vector<8x128xf32> to vector<8x32xf32>
      %cst_68 = arith.constant 0.000000e+00 : f32
      %85 = vector.broadcast %cst_68 : f32 to vector<8x32xf32>
      %86 = arith.subf %85, %84 : vector<8x32xf32>
      %87 = math.exp %86 : vector<8x32xf32>
      %cst_69 = arith.constant 1.000000e+00 : f32
      %88 = vector.broadcast %cst_69 : f32 to vector<8x32xf32>
      %89 = arith.addf %88, %87 : vector<8x32xf32>
      %cst_70 = arith.constant 1.000000e+00 : f32
      %90 = vector.broadcast %cst_70 : f32 to vector<8x32xf32>
      %91 = arith.divf %90, %89 : vector<8x32xf32>
      %92 = vector.extract_strided_slice %83 {offsets = [0, 32], sizes = [8, 32], strides = [1, 1]} : vector<8x128xf32> to vector<8x32xf32>
      %cst_71 = arith.constant 0.000000e+00 : f32
      %93 = vector.broadcast %cst_71 : f32 to vector<8x32xf32>
      %94 = arith.subf %93, %92 : vector<8x32xf32>
      %95 = math.exp %94 : vector<8x32xf32>
      %cst_72 = arith.constant 1.000000e+00 : f32
      %96 = vector.broadcast %cst_72 : f32 to vector<8x32xf32>
      %97 = arith.addf %96, %95 : vector<8x32xf32>
      %cst_73 = arith.constant 1.000000e+00 : f32
      %98 = vector.broadcast %cst_73 : f32 to vector<8x32xf32>
      %99 = arith.divf %98, %97 : vector<8x32xf32>
      %100 = vector.extract_strided_slice %83 {offsets = [0, 64], sizes = [8, 32], strides = [1, 1]} : vector<8x128xf32> to vector<8x32xf32>
      %101 = math.tanh %100 : vector<8x32xf32>
      %102 = vector.extract_strided_slice %83 {offsets = [0, 96], sizes = [8, 32], strides = [1, 1]} : vector<8x128xf32> to vector<8x32xf32>
      %cst_74 = arith.constant 0.000000e+00 : f32
      %103 = vector.broadcast %cst_74 : f32 to vector<8x32xf32>
      %104 = arith.subf %103, %102 : vector<8x32xf32>
      %105 = math.exp %104 : vector<8x32xf32>
      %cst_75 = arith.constant 1.000000e+00 : f32
      %106 = vector.broadcast %cst_75 : f32 to vector<8x32xf32>
      %107 = arith.addf %106, %105 : vector<8x32xf32>
      %cst_76 = arith.constant 1.000000e+00 : f32
      %108 = vector.broadcast %cst_76 : f32 to vector<8x32xf32>
      %109 = arith.divf %108, %107 : vector<8x32xf32>
      %c1_77 = arith.constant 1 : index
      %c0_78 = arith.constant 0 : index
      %c0_79 = arith.constant 0 : index
      %110 = vector.load %arg11[%c1_77, %c0_78, %c0_79] : memref<2x8x32xf32, #tpu.memory_space<vmem>>, vector<1x8x32xf32>
      %111 = vector.shape_cast %110 : vector<1x8x32xf32> to vector<8x32xf32>
      %112 = arith.mulf %99, %111 : vector<8x32xf32>
      %113 = arith.mulf %91, %101 : vector<8x32xf32>
      %114 = arith.addf %112, %113 : vector<8x32xf32>
      %115 = math.tanh %114 : vector<8x32xf32>
      %116 = arith.mulf %109, %115 : vector<8x32xf32>
      %c1_80 = arith.constant 1 : index
      %c0_81 = arith.constant 0 : index
      %c0_82 = arith.constant 0 : index
      %117 = vector.load %arg11[%c1_80, %c0_81, %c0_82] : memref<2x8x32xf32, #tpu.memory_space<vmem>>, vector<1x8x32xf32>
      %118 = vector.shape_cast %117 : vector<1x8x32xf32> to vector<8x32xf32>
      %119 = vector.shape_cast %114 : vector<8x32xf32> to vector<1x8x32xf32>
      tpu.vector_store %arg11[%c1_80, %c0_81, %c0_82], %119 {strides = array<i32>} : memref<2x8x32xf32, #tpu.memory_space<vmem>>, vector<1x8x32xf32>,
      %c1_83 = arith.constant 1 : index
      %c0_84 = arith.constant 0 : index
      %c0_85 = arith.constant 0 : index
      %120 = vector.load %arg10[%c1_83, %c0_84, %c0_85] : memref<2x8x32xf32, #tpu.memory_space<vmem>>, vector<1x8x32xf32>
      %121 = vector.shape_cast %120 : vector<1x8x32xf32> to vector<8x32xf32>
      %122 = vector.shape_cast %116 : vector<8x32xf32> to vector<1x8x32xf32>
      tpu.vector_store %arg10[%c1_83, %c0_84, %c0_85], %122 {strides = array<i32>} : memref<2x8x32xf32, #tpu.memory_space<vmem>>, vector<1x8x32xf32>,
      %123 = vector.broadcast %arg13 : i32 to vector<8x1xi32>
      %124 = arith.cmpi eq, %8, %123 : vector<8x1xi32>
      %c0_86 = arith.constant 0 : index
      %c0_87 = arith.constant 0 : index
      %125 = vector.load %arg12[%c0_86, %c0_87] : memref<8x32xf32, #tpu.memory_space<vmem>>, vector<8x32xf32>
      %126 = vector.shape_cast %124 : vector<8x1xi1> to vector<8x1xi1>
      %127 = vector.broadcast %126 : vector<8x1xi1> to vector<8x32xi1>
      %128 = arith.select %127, %116, %125 : vector<8x32xi1>, vector<8x32xf32>
      %c0_88 = arith.constant 0 : index
      %c0_89 = arith.constant 0 : index
      %129 = vector.load %arg12[%c0_88, %c0_89] : memref<8x32xf32, #tpu.memory_space<vmem>>, vector<8x32xf32>
      tpu.vector_store %arg12[%c0_88, %c0_89], %128 {strides = array<i32>} : memref<8x32xf32, #tpu.memory_space<vmem>>, vector<8x32xf32>,
    }
    %c8_i32_12 = arith.constant 8 : i32
    %c0_13 = arith.constant 0 : index
    %c0_14 = arith.constant 0 : index
    %10 = vector.load %arg12[%c0_13, %c0_14] : memref<8x32xf32, #tpu.memory_space<vmem>>, vector<8x32xf32>
    %c0_15 = arith.constant 0 : index
    %c0_16 = arith.constant 0 : index
    %11 = vector.load %arg7[%c0_15, %c0_16] : memref<32x8xf32, #tpu.memory_space<vmem>>, vector<32x8xf32>
    %cst_17 = arith.constant dense<0.000000e+00> : vector<8x8xf32>
    %12 = tpu.matmul %10, %11, %cst_17 {dimension_numbers = #tpu.dot_dimension_numbers<[1], [0], [0], [1], [0, 0, 1, 1], [], []>} : vector<8x32xf32>, vector<32x8xf32>, vector<8x8xf32> -> vector<8x8xf32>
    %c0_18 = arith.constant 0 : index
    %c0_19 = arith.constant 0 : index
    %13 = vector.load %arg8[%c0_18, %c0_19] : memref<1x8xf32, #tpu.memory_space<vmem>>, vector<1x8xf32>
    %14 = vector.broadcast %13 : vector<1x8xf32> to vector<8x8xf32>
    %15 = arith.addf %12, %14 : vector<8x8xf32>
    %c0_20 = arith.constant 0 : index
    %c0_21 = arith.constant 0 : index
    %16 = vector.load %arg9[%c0_20, %c0_21] : memref<8x8xf32, #tpu.memory_space<vmem>>, vector<8x8xf32>
    tpu.vector_store %arg9[%c0_20, %c0_21], %15 {strides = array<i32>} : memref<8x8xf32, #tpu.memory_space<vmem>>, vector<8x8xf32>,
    return
  }
  func.func @transform_0(%arg0: i32) -> (i32, i32) {
    %c0_i32 = arith.constant 0 : i32
    %c0_i32_0 = arith.constant 0 : i32
    return %arg0, %c0_i32 : i32, i32
  }
  func.func @transform_1(%arg0: i32) -> (i32, i32, i32) {
    %c0_i32 = arith.constant 0 : i32
    %c0_i32_0 = arith.constant 0 : i32
    %c0_i32_1 = arith.constant 0 : i32
    return %c0_i32, %arg0, %c0_i32_0 : i32, i32, i32
  }
  func.func @transform_2(%arg0: i32) -> (i32, i32) {
    %c0_i32 = arith.constant 0 : i32
    %c0_i32_0 = arith.constant 0 : i32
    %c0_i32_1 = arith.constant 0 : i32
    return %c0_i32, %c0_i32_0 : i32, i32
  }
  func.func @transform_3(%arg0: i32) -> (i32, i32, i32) {
    %c0_i32 = arith.constant 0 : i32
    %c0_i32_0 = arith.constant 0 : i32
    %c0_i32_1 = arith.constant 0 : i32
    %c0_i32_2 = arith.constant 0 : i32
    return %c0_i32, %c0_i32_0, %c0_i32_1 : i32, i32, i32
  }
  func.func @transform_4(%arg0: i32) -> (i32, i32, i32) {
    %c0_i32 = arith.constant 0 : i32
    %c0_i32_0 = arith.constant 0 : i32
    %c0_i32_1 = arith.constant 0 : i32
    %c0_i32_2 = arith.constant 0 : i32
    return %c0_i32, %c0_i32_0, %c0_i32_1 : i32, i32, i32
  }
  func.func @transform_5(%arg0: i32) -> (i32, i32, i32) {
    %c0_i32 = arith.constant 0 : i32
    %c0_i32_0 = arith.constant 0 : i32
    %c0_i32_1 = arith.constant 0 : i32
    %c0_i32_2 = arith.constant 0 : i32
    return %c0_i32, %c0_i32_0, %c0_i32_1 : i32, i32, i32
  }
  func.func @transform_6(%arg0: i32) -> (i32, i32) {
    %c0_i32 = arith.constant 0 : i32
    %c0_i32_0 = arith.constant 0 : i32
    %c0_i32_1 = arith.constant 0 : i32
    return %c0_i32, %c0_i32_0 : i32, i32
  }
  func.func @transform_7(%arg0: i32) -> (i32, i32) {
    %c0_i32 = arith.constant 0 : i32
    %c0_i32_0 = arith.constant 0 : i32
    %c0_i32_1 = arith.constant 0 : i32
    return %c0_i32, %c0_i32_0 : i32, i32
  }
  func.func @transform_8(%arg0: i32) -> (i32, i32) {
    %c0_i32 = arith.constant 0 : i32
    %c0_i32_0 = arith.constant 0 : i32
    return %arg0, %c0_i32 : i32, i32
  }
}

</mosaic_0001>

<llo_original>
// kernel: tpu_custom_call.1
$region0: #{tpu_custom_call.1}
  #allocation0 [shape = 'u32[]', space=smem, size = 0x4, offset = 0x4, fixed_abs, tag = 'smem constant byte address 0x4 - core index']
  #allocation1 [shape = 'u32[144,128]{1,0:T(1,128)}', space=vmem, size = 0x12000, scoped, tag = 'internal scratch']
  #allocation2 [shape = 'f32[2,8,32]{2,1,0:T(8,128)}', space=vmem, size = 0x2000, scoped, tag = 'scratch operand']
  #allocation3 [shape = 'f32[2,8,32]{2,1,0:T(8,128)}', space=vmem, size = 0x2000, scoped, tag = 'scratch operand']
  #allocation4 [shape = 'f32[8,32]{1,0:T(8,128)}', space=vmem, size = 0x1000, scoped, tag = 'scratch operand']
  %s0 = inlined_call_operand.vmem [shape: s32[16,1], index: 0, kind: input, shape index: {}]
  %s1 = inlined_call_operand.hbm [shape: f32[8,16,32], index: 1, kind: input, shape index: {}]
  %s2 = inlined_call_operand.hbm [shape: f32[32,128], index: 2, kind: input, shape index: {}]
  %s3 = inlined_call_operand.hbm [shape: f32[1,32,128], index: 3, kind: input, shape index: {}]
  %s4 = inlined_call_operand.vmem [shape: f32[2,32,128], index: 4, kind: input, shape index: {}]
  %s5 = inlined_call_operand.vmem [shape: f32[2,1,128], index: 5, kind: input, shape index: {}]
  %s6 = inlined_call_operand.vmem [shape: f32[32,8], index: 6, kind: input, shape index: {}]
  %s7 = inlined_call_operand.vmem [shape: f32[1,8], index: 7, kind: input, shape index: {}]
  %s8 = inlined_call_operand.vmem [shape: f32[16,8], index: 8, kind: output, shape index: {}]
  %s9 = sld [smem:[#allocation0]]
  $region84: #{tpu_custom_call.1} parent=0
    _
  %s11 = ssub.s32 1, %s9
  %s12 = scalar_select 0, %s11, %s9
  $region1: #{tpu_custom_call.1} parent=0
    #allocation5 [shape = 'u8[65536]{0}', space=vmem, size = 0x10000, scoped, tag = 'input window, operand 1']
    #allocation6 [shape = 's32[2]{0}', space=sflag, size = 0x8, scoped, tag = 'scoped memory for tpu_custom_call.1']
    #allocation7 [shape = 'u8[16384]{0}', space=vmem, size = 0x4000, scoped, tag = 'input window, operand 2, single buffered']
    #allocation8 [shape = 's32[1]{0}', space=sflag, size = 0x4, scoped, tag = 'scoped memory for tpu_custom_call.1']
    #allocation9 [shape = 'u8[16384]{0}', space=vmem, size = 0x4000, scoped, tag = 'input window, operand 3, single buffered']
    %13 = vsyncpa [#allocation6], 0
    %s14 = scalar_lea.sflag [#allocation6], 1
    %15 = vsyncpa %s14, 0
    %16 = vsyncpa [#allocation8], 0
    loop: start=0, step=1, limit=4
    $region2: #{tpu_custom_call.1} parent=1 // loop_pre_header
      _
    $region3: #{tpu_custom_call.1} parent=1 // loop_header
      %s18 = sphi 0, %s22
      %p19 = scmp.ge.s32.totalorder %s18, 4
      %s28 = sphi 0, %s30
      %s31 = sphi 0, %s28
      %s32 = sphi 0, %s31
      %s48 = sphi 0, %s32
      %s54 = sphi 0, %s56
      %s57 = sphi 0, %s54
      %s58 = sphi 0, %s57
      %s74 = sphi 0, %s58
      %s78 = sphi 0, %s78
      %s80 = sphi 0, %s78
      %s81 = sphi 0, %s80
      %s95 = sphi 0, %s81
      %s99 = sphi 0, %s99
      %s101 = sphi 0, %s99
      %s102 = sphi 0, %s101
      %s116 = sphi 0, %s102
      %s120 = sphi 0, %s120
      %s122 = sphi 0, %s120
      %s123 = sphi 0, %s122
      %s137 = sphi 0, %s123
      %s141 = sphi 0, %s141
      %s143 = sphi 0, %s141
      %s144 = sphi 0, %s143
      %s158 = sphi 0, %s144
      %s162 = sphi 0, %s162
      %s164 = sphi 0, %s162
      %s165 = sphi 0, %s164
      %s179 = sphi 0, %s165
      %s183 = sphi 0, %s183
      %s185 = sphi 0, %s183
      %s186 = sphi 0, %s185
      %s200 = sphi 0, %s186
      %s206 = sphi 0, %s208
      %s209 = sphi 0, %s206
      %s210 = sphi 0, %s209
      %s226 = sphi 0, %s210
    $region4: #{tpu_custom_call.1} parent=1 // loop_header_branch
      %21 = sbr.rel (%p19) target = $region8
    $region5: #{tpu_custom_call.1} parent=1 // loop_body
      %s23 = ssub.s32 %s18, 1
      %s24 = ssub.s32 %s18, 2
      %s25 = sadd.s32 %s18, 1
      %s26 = ssub.s32 %s18, %s25
      %p27 = scmp.eq.s32.totalorder %s26, 0
      %s29 = sadd.s32 %s28, 1
      %s30 = scalar_select %p27, %s28, %s29
      %p33 = pneg %p27
      %p34 = scmp.eq.s32.totalorder %s18, 1
      %p35 = por %p33, %p34
      %p36 = scmp.ne.s32.totalorder %s28, %s31
      %p37 = scmp.eq.s32.totalorder %s18, 0
      %p38 = por %p36, %p37
      %p39 = scmp.ne.s32.totalorder %s28, %s31
      %p40 = scmp.eq.s32.totalorder %s23, 1
      %p41 = por %p39, %p40
      %p42 = scmp.ne.s32.totalorder %s31, %s32
      %p43 = scmp.eq.s32.totalorder %s23, 0
      %p44 = por %p42, %p43
      %p45 = scmp.ne.s32.totalorder %s31, %s32
      %p46 = scmp.eq.s32.totalorder %s24, 1
      %p47 = por %p45, %p46
      %p49 = scmp.ne.s32.totalorder %s32, %s48
      %p50 = scmp.eq.s32.totalorder %s24, 0
      %p51 = por %p49, %p50
      %s52 = ssub.s32 %s18, %s25
      %p53 = scmp.eq.s32.totalorder %s52, 0
      %s55 = sadd.s32 %s54, 1
      %s56 = scalar_select %p53, %s54, %s55
      %p59 = pneg %p53
      %p60 = scmp.eq.s32.totalorder %s18, 1
      %p61 = por %p59, %p60
      %p62 = scmp.ne.s32.totalorder %s54, %s57
      %p63 = scmp.eq.s32.totalorder %s18, 0
      %p64 = por %p62, %p63
      %p65 = scmp.ne.s32.totalorder %s54, %s57
      %p66 = scmp.eq.s32.totalorder %s23, 1
      %p67 = por %p65, %p66
      %p68 = scmp.ne.s32.totalorder %s57, %s58
      %p69 = scmp.eq.s32.totalorder %s23, 0
      %p70 = por %p68, %p69
      %p71 = scmp.ne.s32.totalorder %s57, %s58
      %p72 = scmp.eq.s32.totalorder %s24, 1
      %p73 = por %p71, %p72
      %p75 = scmp.ne.s32.totalorder %s58, %s74
      %p76 = scmp.eq.s32.totalorder %s24, 0
      %p77 = por %p75, %p76
      %s79 = sadd.s32 %s78, 1
      %p82 = scmp.eq.s32.totalorder %s18, 1
      %p83 = scmp.ne.s32.totalorder %s78, %s80
      %p84 = scmp.eq.s32.totalorder %s18, 0
      %p85 = por %p83, %p84
      %p86 = scmp.ne.s32.totalorder %s78, %s80
      %p87 = scmp.eq.s32.totalorder %s23, 1
      %p88 = por %p86, %p87
      %p89 = scmp.ne.s32.totalorder %s80, %s81
      %p90 = scmp.eq.s32.totalorder %s23, 0
      %p91 = por %p89, %p90
      %p92 = scmp.ne.s32.totalorder %s80, %s81
      %p93 = scmp.eq.s32.totalorder %s24, 1
      %p94 = por %p92, %p93
      %p96 = scmp.ne.s32.totalorder %s81, %s95
      %p97 = scmp.eq.s32.totalorder %s24, 0
      %p98 = por %p96, %p97
      %s100 = sadd.s32 %s99, 1
      %p103 = scmp.eq.s32.totalorder %s18, 1
      %p104 = scmp.ne.s32.totalorder %s99, %s101
      %p105 = scmp.eq.s32.totalorder %s18, 0
      %p106 = por %p104, %p105
      %p107 = scmp.ne.s32.totalorder %s99, %s101
      %p108 = scmp.eq.s32.totalorder %s23, 1
      %p109 = por %p107, %p108
      %p110 = scmp.ne.s32.totalorder %s101, %s102
      %p111 = scmp.eq.s32.totalorder %s23, 0
      %p112 = por %p110, %p111
      %p113 = scmp.ne.s32.totalorder %s101, %s102
      %p114 = scmp.eq.s32.totalorder %s24, 1
      %p115 = por %p113, %p114
      %p117 = scmp.ne.s32.totalorder %s102, %s116
      %p118 = scmp.eq.s32.totalorder %s24, 0
      %p119 = por %p117, %p118
      %s121 = sadd.s32 %s120, 1
      %p124 = scmp.eq.s32.totalorder %s18, 1
      %p125 = scmp.ne.s32.totalorder %s120, %s122
      %p126 = scmp.eq.s32.totalorder %s18, 0
      %p127 = por %p125, %p126
      %p128 = scmp.ne.s32.totalorder %s120, %s122
      %p129 = scmp.eq.s32.totalorder %s23, 1
      %p130 = por %p128, %p129
      %p131 = scmp.ne.s32.totalorder %s122, %s123
      %p132 = scmp.eq.s32.totalorder %s23, 0
      %p133 = por %p131, %p132
      %p134 = scmp.ne.s32.totalorder %s122, %s123
      %p135 = scmp.eq.s32.totalorder %s24, 1
      %p136 = por %p134, %p135
      %p138 = scmp.ne.s32.totalorder %s123, %s137
      %p139 = scmp.eq.s32.totalorder %s24, 0
      %p140 = por %p138, %p139
      %s142 = sadd.s32 %s141, 1
      %p145 = scmp.eq.s32.totalorder %s18, 1
      %p146 = scmp.ne.s32.totalorder %s141, %s143
      %p147 = scmp.eq.s32.totalorder %s18, 0
      %p148 = por %p146, %p147
      %p149 = scmp.ne.s32.totalorder %s141, %s143
      %p150 = scmp.eq.s32.totalorder %s23, 1
      %p151 = por %p149, %p150
      %p152 = scmp.ne.s32.totalorder %s143, %s144
      %p153 = scmp.eq.s32.totalorder %s23, 0
      %p154 = por %p152, %p153
      %p155 = scmp.ne.s32.totalorder %s143, %s144
      %p156 = scmp.eq.s32.totalorder %s24, 1
      %p157 = por %p155, %p156
      %p159 = scmp.ne.s32.totalorder %s144, %s158
      %p160 = scmp.eq.s32.totalorder %s24, 0
      %p161 = por %p159, %p160
      %s163 = sadd.s32 %s162, 1
      %p166 = scmp.eq.s32.totalorder %s18, 1
      %p167 = scmp.ne.s32.totalorder %s162, %s164
      %p168 = scmp.eq.s32.totalorder %s18, 0
      %p169 = por %p167, %p168
      %p170 = scmp.ne.s32.totalorder %s162, %s164
      %p171 = scmp.eq.s32.totalorder %s23, 1
      %p172 = por %p170, %p171
      %p173 = scmp.ne.s32.totalorder %s164, %s165
      %p174 = scmp.eq.s32.totalorder %s23, 0
      %p175 = por %p173, %p174
      %p176 = scmp.ne.s32.totalorder %s164, %s165
      %p177 = scmp.eq.s32.totalorder %s24, 1
      %p178 = por %p176, %p177
      %p180 = scmp.ne.s32.totalorder %s165, %s179
      %p181 = scmp.eq.s32.totalorder %s24, 0
      %p182 = por %p180, %p181
      %s184 = sadd.s32 %s183, 1
      %p187 = scmp.eq.s32.totalorder %s18, 1
      %p188 = scmp.ne.s32.totalorder %s183, %s185
      %p189 = scmp.eq.s32.totalorder %s18, 0
      %p190 = por %p188, %p189
      %p191 = scmp.ne.s32.totalorder %s183, %s185
      %p192 = scmp.eq.s32.totalorder %s23, 1
      %p193 = por %p191, %p192
      %p194 = scmp.ne.s32.totalorder %s185, %s186
      %p195 = scmp.eq.s32.totalorder %s23, 0
      %p196 = por %p194, %p195
      %p197 = scmp.ne.s32.totalorder %s185, %s186
      %p198 = scmp.eq.s32.totalorder %s24, 1
      %p199 = por %p197, %p198
      %p201 = scmp.ne.s32.totalorder %s186, %s200
      %p202 = scmp.eq.s32.totalorder %s24, 0
      %p203 = por %p201, %p202
      %s204 = ssub.s32 %s18, %s25
      %p205 = scmp.eq.s32.totalorder %s204, 0
      %s207 = sadd.s32 %s206, 1
      %s208 = scalar_select %p205, %s206, %s207
      %p211 = pneg %p205
      %p212 = scmp.eq.s32.totalorder %s18, 1
      %p213 = por %p211, %p212
      %p214 = scmp.ne.s32.totalorder %s206, %s209
      %p215 = scmp.eq.s32.totalorder %s18, 0
      %p216 = por %p214, %p215
      %p217 = scmp.ne.s32.totalorder %s206, %s209
      %p218 = scmp.eq.s32.totalorder %s23, 1
      %p219 = por %p217, %p218
      %p220 = scmp.ne.s32.totalorder %s209, %s210
      %p221 = scmp.eq.s32.totalorder %s23, 0
      %p222 = por %p220, %p221
      %p223 = scmp.ne.s32.totalorder %s209, %s210
      %p224 = scmp.eq.s32.totalorder %s24, 1
      %p225 = por %p223, %p224
      %p227 = scmp.ne.s32.totalorder %s210, %s226
      %p228 = scmp.eq.s32.totalorder %s24, 0
      %p229 = por %p227, %p228
      %p230 = scmp.le.s32.totalorder 1, %s18
      %p231 = scmp.lt.s32.totalorder %s18, 3
      %p232 = pnand %p230, %p231
      %p233 = pneg %p232
      // Predicated region
      $region9: #{tpu_custom_call.1} parent=5 // pred_check
        _
      $region10: #{tpu_custom_call.1} parent=5 // pred_check_branch
        %235 = sbr.rel (%p232) target = $region12
      $region11: #{tpu_custom_call.1} parent=5 // pred_region
        %s236 = ssub.s32 %s18, 1
        // Predicated region
        $region13: #{tpu_custom_call.1} parent=11 // pred_check
          %p237 = pneg %p91
        $region14: #{tpu_custom_call.1} parent=11 // pred_check_branch
          %239 = sbr.rel (%p237) target = $region16
        $region15: #{tpu_custom_call.1} parent=11 // pred_region
          %s241 = ssub.s32 512, 512
          %242 = vsyncadd [#allocation8], %s241
          %s243 = sshll.u32 [#allocation7], 4
          %s244 = int_to_ptr.vmem [resolvable:$true] %s243
          %249 = dma.hbm_to_vmem [thread:$0]  %s2, 512, %s244, [#allocation8], 128, 128, 8
        $region16: #{tpu_custom_call.1} parent=11 // pred_fallthru
          _
        // Predicated region
        $region17: #{tpu_custom_call.1} parent=11 // pred_check
          %p250 = pneg %p112
        $region18: #{tpu_custom_call.1} parent=11 // pred_check_branch
          %252 = sbr.rel (%p250) target = $region20
        $region19: #{tpu_custom_call.1} parent=11 // pred_region
          %s254 = ssub.s32 512, 512
          %255 = vsyncadd [#allocation8], %s254
          %s256 = sshll.u32 [#allocation9], 4
          %s257 = int_to_ptr.vmem [resolvable:$true] %s256
          %262 = dma.hbm_to_vmem [thread:$0]  %s3, 512, %s257, [#allocation8], 128, 128, 8
        $region20: #{tpu_custom_call.1} parent=11 // pred_fallthru
          _
        // Predicated region
        $region21: #{tpu_custom_call.1} parent=11 // pred_check
          %p263 = pneg %p133
        $region22: #{tpu_custom_call.1} parent=11 // pred_check_branch
          %265 = sbr.rel (%p263) target = $region24
        $region23: #{tpu_custom_call.1} parent=11 // pred_region
          _
        $region24: #{tpu_custom_call.1} parent=11 // pred_fallthru
          _
        // Predicated region
        $region25: #{tpu_custom_call.1} parent=11 // pred_check
          %p266 = pneg %p154
        $region26: #{tpu_custom_call.1} parent=11 // pred_check_branch
          %268 = sbr.rel (%p266) target = $region28
        $region27: #{tpu_custom_call.1} parent=11 // pred_region
          _
        $region28: #{tpu_custom_call.1} parent=11 // pred_fallthru
          _
        // Predicated region
        $region29: #{tpu_custom_call.1} parent=11 // pred_check
          %p269 = pneg %p175
        $region30: #{tpu_custom_call.1} parent=11 // pred_check_branch
          %271 = sbr.rel (%p269) target = $region32
        $region31: #{tpu_custom_call.1} parent=11 // pred_region
          _
        $region32: #{tpu_custom_call.1} parent=11 // pred_fallthru
          _
        // Predicated region
        $region33: #{tpu_custom_call.1} parent=11 // pred_check
          %p272 = pneg %p196
        $region34: #{tpu_custom_call.1} parent=11 // pred_check_branch
          %274 = sbr.rel (%p272) target = $region36
        $region35: #{tpu_custom_call.1} parent=11 // pred_region
          _
        $region36: #{tpu_custom_call.1} parent=11 // pred_fallthru
          _
      $region12: #{tpu_custom_call.1} parent=5 // pred_fallthru
        _
      %p275 = scmp.lt.s32.totalorder %s18, 2
      // Predicated region
      $region37: #{tpu_custom_call.1} parent=5 // pred_check
        %p276 = pneg %p275
      $region38: #{tpu_custom_call.1} parent=5 // pred_check_branch
        %278 = sbr.rel (%p276) target = $region40
      $region39: #{tpu_custom_call.1} parent=5 // pred_region
        // Predicated region
        $region41: #{tpu_custom_call.1} parent=39 // pred_check
          %p279 = pneg %p38
        $region42: #{tpu_custom_call.1} parent=39 // pred_check_branch
          %281 = sbr.rel (%p279) target = $region44
        $region43: #{tpu_custom_call.1} parent=39 // pred_region
          %p282 = scmp.lt.s32.totalorder %s18, 1
          %s283 = scalar_select %p282, %s18, 1
          %s284 = smul.addr %s283, 8
          %s285 = scalar_lea.vmem %s0, %s284
        $region44: #{tpu_custom_call.1} parent=39 // pred_fallthru
          _
        // Predicated region
        $region45: #{tpu_custom_call.1} parent=39 // pred_check
          %p286 = pneg %p64
        $region46: #{tpu_custom_call.1} parent=39 // pred_check_branch
          %288 = sbr.rel (%p286) target = $region48
        $region47: #{tpu_custom_call.1} parent=39 // pred_region
          %s289 = sand.u32 %s54, 1
          %s290 = scalar_lea.sflag [#allocation6], %s289
          %s291 = sand.u32 %s54, 1
          %s292 = smul.addr %s291, 64
          %s293 = scalar_lea.vmem [#allocation5], %s292
          %s295 = ssub.s32 1024, 1024
          %296 = vsyncadd %s290, %s295
          %s297 = smul.addr %s18, 128
          %s298 = scalar_lea.hbm %s1, %s297
          %s299 = sshll.u32 %s293, 4
          %s300 = int_to_ptr.vmem [resolvable:$true] %s299
          %305 = dma.hbm_to_vmem [thread:$0]  %s298, 1024, %s300, %s290, 256, 128, 8
        $region48: #{tpu_custom_call.1} parent=39 // pred_fallthru
          _
      $region40: #{tpu_custom_call.1} parent=5 // pred_fallthru
        _
      %p306 = scmp.le.s32.totalorder 1, %s18
      %p307 = scmp.lt.s32.totalorder %s18, 3
      %p308 = pnand %p306, %p307
      %p309 = pneg %p308
      // Predicated region
      $region49: #{tpu_custom_call.1} parent=5 // pred_check
        _
      $region50: #{tpu_custom_call.1} parent=5 // pred_check_branch
        %311 = sbr.rel (%p308) target = $region52
      $region51: #{tpu_custom_call.1} parent=5 // pred_region
        %s312 = ssub.s32 %s18, 1
        %s313 = sand.u32 %s57, 1
        %s314 = scalar_lea.sflag [#allocation6], %s313
        %s315 = sand.u32 %s57, 1
        %s316 = smul.addr %s315, 64
        %s317 = scalar_lea.vmem [#allocation5], %s316
        // Predicated region
        $region53: #{tpu_custom_call.1} parent=51 // pred_check
          %p318 = pneg %p70
        $region54: #{tpu_custom_call.1} parent=51 // pred_check_branch
          %320 = sbr.rel (%p318) target = $region56
        $region55: #{tpu_custom_call.1} parent=51 // pred_region
          %321 = dma.done %s314, 1024
        $region56: #{tpu_custom_call.1} parent=51 // pred_fallthru
          _
        // Predicated region
        $region57: #{tpu_custom_call.1} parent=51 // pred_check
          %p322 = pneg %p91
        $region58: #{tpu_custom_call.1} parent=51 // pred_check_branch
          %324 = sbr.rel (%p322) target = $region60
        $region59: #{tpu_custom_call.1} parent=51 // pred_region
          %325 = dma.done [#allocation8], 512
        $region60: #{tpu_custom_call.1} parent=51 // pred_fallthru
          _
        // Predicated region
        $region61: #{tpu_custom_call.1} parent=51 // pred_check
          %p326 = pneg %p112
        $region62: #{tpu_custom_call.1} parent=51 // pred_check_branch
          %328 = sbr.rel (%p326) target = $region64
        $region63: #{tpu_custom_call.1} parent=51 // pred_region
          %329 = dma.done [#allocation8], 512
        $region64: #{tpu_custom_call.1} parent=51 // pred_fallthru
          _
        %p330 = scmp.lt.s32.totalorder %s23, 1
        %s331 = scalar_select %p330, %s23, 1
        %s332 = smul.addr %s331, 8
        %s333 = scalar_lea.vmem %s0, %s332
        %p334 = pneg %p44
        %p335 = pneg %p41
        %s336 = sand.u32 %s57, 1
        %s337 = scalar_lea.sflag [#allocation6], %s336
        %s338 = sand.u32 %s57, 1
        %s339 = smul.addr %s338, 64
        %s340 = scalar_lea.vmem [#allocation5], %s339
        %p341 = pneg %p70
        %p342 = pneg %p67
        %p343 = pneg %p91
        %p344 = pneg %p88
        %p345 = pneg %p112
        %p346 = pneg %p109
        %p347 = pneg %p133
        %p348 = pneg %p130
        %p349 = pneg %p154
        %p350 = pneg %p151
        %p351 = pneg %p175
        %p352 = pneg %p172
        %p353 = pneg %p196
        %p354 = pneg %p193
        %p355 = pneg %p222
        %p356 = pneg %p219
        %p357 = scmp.lt.s32.totalorder %s23, 1
        %s358 = scalar_select %p357, %s23, 1
        %s359 = smul.addr %s358, 8
        %s360 = scalar_lea.vmem %s8, %s359
        %p361 = scmp.lt.s32.totalorder %s23, 1
        %s362 = scalar_select %p361, %s23, 1
        %s363 = smul.addr %s362, 8
        %s364 = scalar_lea.vmem %s0, %s363
        %p365 = scmp.lt.s32.totalorder %s23, 1
        %s366 = scalar_select %p365, %s23, 1
        %s367 = smul.addr %s366, 8
        %s368 = scalar_lea.vmem %s8, %s367
        %vm369 = vcmask 261120
        %370 = vst.msk [vmem:[#allocation2] sm:$0xff] %vm369, 0.0
        %371 = vst.msk [vmem:[#allocation2 + $0x8] sm:$0xff] %vm369, 0.0
        %372 = vst.msk [vmem:[#allocation3] sm:$0xff] %vm369, 0.0
        %373 = vst.msk [vmem:[#allocation3 + $0x8] sm:$0xff] %vm369, 0.0
        %374 = vst.msk [vmem:[#allocation4] sm:$0xff] %vm369, 0.0
        %v375 = vld [vmem:[%s364] sm:$0xff]
        %v376 = vsub.s32 %v375, 1
        loop: start=0, step=1, limit=8
        $region65: #{tpu_custom_call.1} parent=51 // loop_pre_header
          _
        $region66: #{tpu_custom_call.1} parent=51 // loop_header
          %s378 = sphi 0, %s382
          %p379 = scmp.ge.s32.totalorder %s378, 8
        $region67: #{tpu_custom_call.1} parent=51 // loop_header_branch
          %381 = sbr.rel (%p379) target = $region71
        $region68: #{tpu_custom_call.1} parent=51 // loop_body
          %s383 = smul.u32 %s378, 8
          %s384 = scalar_lea.vmem %s317, %s383 [#allocation5]
          %v385 = vld [vmem:[%s384] sm:$0xff]
          %v386 = vld [vmem:[#allocation7] sm:$0xff]
          %v387 = vld [vmem:[#allocation7 + $0x8] sm:$0xff]
          %v388 = vld [vmem:[#allocation7 + $0x10] sm:$0xff]
          %v389 = vld [vmem:[#allocation7 + $0x18] sm:$0xff]
          %v390 = vld [vmem:[#allocation2] sm:$0xff]
          %v391 = vld [vmem:[%s4] sm:$0xff]
          %v392 = vld [vmem:[%s4 + $0x8] sm:$0xff]
          %v393 = vld [vmem:[%s4 + $0x10] sm:$0xff]
          %v394 = vld [vmem:[%s4 + $0x18] sm:$0xff]
          %v396 = vsel %vm369, %v390, 0
          %398 = vmatprep.subr.mxu0 0.0
          %399 = vmatpush1.msra.mxu0 %v391
          %400 = vmatprep.subr.mxu0 0.0
          %401 = vmatpush1.msra.mxu0 %v392
          %402 = vmatprep.subr.mxu0 0.0
          %403 = vmatpush1.msra.mxu0 %v393
          %404 = vmatprep.subr.mxu0 0.0
          %405 = vmatpush1.msra.mxu0 %v394
          %406 = vmatprep.subr.mxu0 0.0
          %407 = vmatpush1.msra.mxu0 0.0
          %408 = vmatprep.subr.mxu0 0.0
          %409 = vmatpush1.msra.mxu0 0.0
          %410 = vmatprep.subr.mxu0 0.0
          %411 = vmatpush1.msra.mxu0 0.0
          %412 = vmatprep.subr.mxu0 0.0
          %413 = vmatpush1.msra.mxu0 0.0
          %414 = vmatprep.subr.mxu0 0.0
          %415 = vmatpush1.msra.mxu0 0.0
          %416 = vmatprep.subr.mxu0 0.0
          %417 = vmatpush1.msra.mxu0 0.0
          %418 = vmatprep.subr.mxu0 0.0
          %419 = vmatpush1.msra.mxu0 0.0
          %420 = vmatprep.subr.mxu0 0.0
          %421 = vmatpush1.msra.mxu0 0.0
          %422 = vmatprep.subr.mxu0 0.0
          %423 = vmatpush1.msra.mxu0 0.0
          %424 = vmatprep.subr.mxu0 0.0
          %425 = vmatpush1.msra.mxu0 0.0
          %426 = vmatprep.subr.mxu0 0.0
          %427 = vmatpush1.msra.mxu0 0.0
          %428 = vmatprep.subr.mxu0 0.0
          %429 = vmatpush1.msra.mxu0 0.0
          %430 = vmatprep.subr.mxu0 0.0
          %431 = vmatpush1.msra.mxu0 0.0
          %432 = vmatprep.subr.mxu0 0.0
          %433 = vmatpush1.msra.mxu0 0.0
          %434 = vmatprep.subr.mxu0 0.0
          %435 = vmatpush1.msra.mxu0 0.0
          %436 = vmatprep.subr.mxu0 0.0
          %437 = vmatpush1.msra.mxu0 0.0
          %438 = vmatprep.subr.mxu0 0.0
          %439 = vmatpush1.msra.mxu0 0.0
          %440 = vmatprep.subr.mxu0 0.0
          %441 = vmatpush1.msra.mxu0 0.0
          %442 = vmatprep.subr.mxu0 0.0
          %443 = vmatpush1.msra.mxu0 0.0
          %444 = vmatprep.subr.mxu0 0.0
          %445 = vmatpush1.msra.mxu0 0.0
          %446 = vmatprep.subr.mxu0 0.0
          %447 = vmatpush1.msra.mxu0 0.0
          %448 = vmatprep.subr.mxu0 0.0
          %449 = vmatpush1.msra.mxu0 0.0
          %450 = vmatprep.subr.mxu0 0.0
          %451 = vmatpush1.msra.mxu0 0.0
          %452 = vmatprep.subr.mxu0 0.0
          %453 = vmatpush1.msra.mxu0 0.0
          %454 = vmatprep.subr.mxu0 0.0
          %455 = vmatpush1.msra.mxu0 0.0
          %456 = vmatprep.subr.mxu0 0.0
          %457 = vmatpush1.msra.mxu0 0.0
          %458 = vmatprep.subr.mxu0 0.0
          %459 = vmatpush1.msra.mxu0 0.0
          %460 = vmatprep.subr.mxu0 0.0
          %461 = vmatpush1.msra.mxu0 0.0
          %462 = vmatprep.mubr.f32.mxu0 0.0
          %463 = vmatmul.mubr.f32.gmra.mrb[0].mxu0 %v396
          %v464 = vpop.f32.mrb[0].mxu0
          %v465 = vadd.f32 0.0, %v464
          %v466 = vpop.f32.mrb[0].mxu0
          %467 = vdwg.mxu0
          %v469 = vsel %vm369, %v385, 0
          %471 = vmatprep.subr.mxu0 0.0
          %472 = vmatpush1.msra.mxu0 %v386
          %473 = vmatprep.subr.mxu0 0.0
          %474 = vmatpush1.msra.mxu0 %v387
          %475 = vmatprep.subr.mxu0 0.0
          %476 = vmatpush1.msra.mxu0 %v388
          %477 = vmatprep.subr.mxu0 0.0
          %478 = vmatpush1.msra.mxu0 %v389
          %479 = vmatprep.subr.mxu0 0.0
          %480 = vmatpush1.msra.mxu0 0.0
          %481 = vmatprep.subr.mxu0 0.0
          %482 = vmatpush1.msra.mxu0 0.0
          %483 = vmatprep.subr.mxu0 0.0
          %484 = vmatpush1.msra.mxu0 0.0
          %485 = vmatprep.subr.mxu0 0.0
          %486 = vmatpush1.msra.mxu0 0.0
          %487 = vmatprep.subr.mxu0 0.0
          %488 = vmatpush1.msra.mxu0 0.0
          %489 = vmatprep.subr.mxu0 0.0
          %490 = vmatpush1.msra.mxu0 0.0
          %491 = vmatprep.subr.mxu0 0.0
          %492 = vmatpush1.msra.mxu0 0.0
          %493 = vmatprep.subr.mxu0 0.0
          %494 = vmatpush1.msra.mxu0 0.0
          %495 = vmatprep.subr.mxu0 0.0
          %496 = vmatpush1.msra.mxu0 0.0
          %497 = vmatprep.subr.mxu0 0.0
          %498 = vmatpush1.msra.mxu0 0.0
          %499 = vmatprep.subr.mxu0 0.0
          %500 = vmatpush1.msra.mxu0 0.0
          %501 = vmatprep.subr.mxu0 0.0
          %502 = vmatpush1.msra.mxu0 0.0
          %503 = vmatprep.subr.mxu0 0.0
          %504 = vmatpush1.msra.mxu0 0.0
          %505 = vmatprep.subr.mxu0 0.0
          %506 = vmatpush1.msra.mxu0 0.0
          %507 = vmatprep.subr.mxu0 0.0
          %508 = vmatpush1.msra.mxu0 0.0
          %509 = vmatprep.subr.mxu0 0.0
          %510 = vmatpush1.msra.mxu0 0.0
          %511 = vmatprep.subr.mxu0 0.0
          %512 = vmatpush1.msra.mxu0 0.0
          %513 = vmatprep.subr.mxu0 0.0
          %514 = vmatpush1.msra.mxu0 0.0
          %515 = vmatprep.subr.mxu0 0.0
          %516 = vmatpush1.msra.mxu0 0.0
          %517 = vmatprep.subr.mxu0 0.0
          %518 = vmatpush1.msra.mxu0 0.0
          %519 = vmatprep.subr.mxu0 0.0
          %520 = vmatpush1.msra.mxu0 0.0
          %521 = vmatprep.subr.mxu0 0.0
          %522 = vmatpush1.msra.mxu0 0.0
          %523 = vmatprep.subr.mxu0 0.0
          %524 = vmatpush1.msra.mxu0 0.0
          %525 = vmatprep.subr.mxu0 0.0
          %526 = vmatpush1.msra.mxu0 0.0
          %527 = vmatprep.subr.mxu0 0.0
          %528 = vmatpush1.msra.mxu0 0.0
          %529 = vmatprep.subr.mxu0 0.0
          %530 = vmatpush1.msra.mxu0 0.0
          %531 = vmatprep.subr.mxu0 0.0
          %532 = vmatpush1.msra.mxu0 0.0
          %533 = vmatprep.subr.mxu0 0.0
          %534 = vmatpush1.msra.mxu0 0.0
          %535 = vmatprep.mubr.f32.mxu0 0.0
          %536 = vmatmul.mubr.f32.gmra.mrb[0].mxu0 %v469
          %v537 = vpop.f32.mrb[0].mxu0
          %v538 = vadd.f32 %v465, %v537
          %v539 = vpop.f32.mrb[0].mxu0
          %540 = vdwg.mxu0
          %v541 = vld [vmem:[%s5] sm:$0x1]
          %v543 = vlaneseq
          %v544 = vshrl.u32 %v543, 7
          %v545 = vsub.s32 0, %v544
          %v546 = vrot.slane %v541, %v545
          %v548 = vadd.f32 %v538, %v546
          %v549 = vsub.f32 0.0, %v548
          %v550 = vmul.f32 %v549, 1.442695
          %v551 = vpow.pop %v550
          %v552 = vadd.f32 %v551, 1.0
          %v553 = vrcp.pop %v552
          %v554 = vmul.f32 1.0, %v553
          %v555 = vtanh.pop %v548
          %v556 = vld [vmem:[#allocation3] sm:$0xff]
          %558 = vrot.lane.b32.xlu0 %v556, 32
          %v559 = vpop.permute.xlu0 %558
          %v561 = vmul.f32 %v554, %v559
          %563 = vrot.lane.b32.xlu0 %v555, 64
          %v564 = vpop.permute.xlu0 %563
          %v566 = vmul.f32 %v554, %v564
          %568 = vrot.lane.b32.xlu0 %v566, 32
          %v569 = vpop.permute.xlu0 %568
          %v571 = vadd.f32 %v561, %v569
          %v572 = vtanh.pop %v571
          %574 = vrot.lane.b32.xlu0 %v572, 64
          %v575 = vpop.permute.xlu0 %574
          %v577 = vmul.f32 %v554, %v575
          %579 = vrot.lane.b32.xlu0 %v571, 96
          %v580 = vpop.permute.xlu0 %579
          %582 = vst.msk [vmem:[#allocation3] sm:$0xff] %vm369, %v580
          %584 = vrot.lane.b32.xlu0 %v577, 32
          %v585 = vpop.permute.xlu0 %584
          %587 = vst.msk [vmem:[#allocation2] sm:$0xff] %vm369, %v585
          %v588 = vld [vmem:[#allocation9] sm:$0xff]
          %v589 = vld [vmem:[#allocation9 + $0x8] sm:$0xff]
          %v590 = vld [vmem:[#allocation9 + $0x10] sm:$0xff]
          %v591 = vld [vmem:[#allocation9 + $0x18] sm:$0xff]
          %s592 = scalar_lea.vmem [#allocation2], 8
          %v593 = vld [vmem:[%s592] sm:$0xff]
          %s594 = scalar_lea.vmem %s4, 32
          %v595 = vld [vmem:[%s594] sm:$0xff]
          %v596 = vld [vmem:[%s594 + $0x8] sm:$0xff]
          %v597 = vld [vmem:[%s594 + $0x10] sm:$0xff]
          %v598 = vld [vmem:[%s594 + $0x18] sm:$0xff]
          %v600 = vsel %vm369, %v593, 0
          %602 = vmatprep.subr.mxu0 0.0
          %603 = vmatpush1.msra.mxu0 %v595
          %604 = vmatprep.subr.mxu0 0.0
          %605 = vmatpush1.msra.mxu0 %v596
          %606 = vmatprep.subr.mxu0 0.0
          %607 = vmatpush1.msra.mxu0 %v597
          %608 = vmatprep.subr.mxu0 0.0
          %609 = vmatpush1.msra.mxu0 %v598
          %610 = vmatprep.subr.mxu0 0.0
          %611 = vmatpush1.msra.mxu0 0.0
          %612 = vmatprep.subr.mxu0 0.0
          %613 = vmatpush1.msra.mxu0 0.0
          %614 = vmatprep.subr.mxu0 0.0
          %615 = vmatpush1.msra.mxu0 0.0
          %616 = vmatprep.subr.mxu0 0.0
          %617 = vmatpush1.msra.mxu0 0.0
          %618 = vmatprep.subr.mxu0 0.0
          %619 = vmatpush1.msra.mxu0 0.0
          %620 = vmatprep.subr.mxu0 0.0
          %621 = vmatpush1.msra.mxu0 0.0
          %622 = vmatprep.subr.mxu0 0.0
          %623 = vmatpush1.msra.mxu0 0.0
          %624 = vmatprep.subr.mxu0 0.0
          %625 = vmatpush1.msra.mxu0 0.0
          %626 = vmatprep.subr.mxu0 0.0
          %627 = vmatpush1.msra.mxu0 0.0
          %628 = vmatprep.subr.mxu0 0.0
          %629 = vmatpush1.msra.mxu0 0.0
          %630 = vmatprep.subr.mxu0 0.0
          %631 = vmatpush1.msra.mxu0 0.0
          %632 = vmatprep.subr.mxu0 0.0
          %633 = vmatpush1.msra.mxu0 0.0
          %634 = vmatprep.subr.mxu0 0.0
          %635 = vmatpush1.msra.mxu0 0.0
          %636 = vmatprep.subr.mxu0 0.0
          %637 = vmatpush1.msra.mxu0 0.0
          %638 = vmatprep.subr.mxu0 0.0
          %639 = vmatpush1.msra.mxu0 0.0
          %640 = vmatprep.subr.mxu0 0.0
          %641 = vmatpush1.msra.mxu0 0.0
          %642 = vmatprep.subr.mxu0 0.0
          %643 = vmatpush1.msra.mxu0 0.0
          %644 = vmatprep.subr.mxu0 0.0
          %645 = vmatpush1.msra.mxu0 0.0
          %646 = vmatprep.subr.mxu0 0.0
          %647 = vmatpush1.msra.mxu0 0.0
          %648 = vmatprep.subr.mxu0 0.0
          %649 = vmatpush1.msra.mxu0 0.0
          %650 = vmatprep.subr.mxu0 0.0
          %651 = vmatpush1.msra.mxu0 0.0
          %652 = vmatprep.subr.mxu0 0.0
          %653 = vmatpush1.msra.mxu0 0.0
          %654 = vmatprep.subr.mxu0 0.0
          %655 = vmatpush1.msra.mxu0 0.0
          %656 = vmatprep.subr.mxu0 0.0
          %657 = vmatpush1.msra.mxu0 0.0
          %658 = vmatprep.subr.mxu0 0.0
          %659 = vmatpush1.msra.mxu0 0.0
          %660 = vmatprep.subr.mxu0 0.0
          %661 = vmatpush1.msra.mxu0 0.0
          %662 = vmatprep.subr.mxu0 0.0
          %663 = vmatpush1.msra.mxu0 0.0
          %664 = vmatprep.subr.mxu0 0.0
          %665 = vmatpush1.msra.mxu0 0.0
          %666 = vmatprep.mubr.f32.mxu0 0.0
          %667 = vmatmul.mubr.f32.gmra.mrb[0].mxu0 %v600
          %v668 = vpop.f32.mrb[0].mxu0
          %v669 = vadd.f32 0.0, %v668
          %v670 = vpop.f32.mrb[0].mxu0
          %671 = vdwg.mxu0
          %v672 = vsel %vm369, %v585, 0
          %674 = vmatprep.subr.mxu0 0.0
          %675 = vmatpush1.msra.mxu0 %v588
          %676 = vmatprep.subr.mxu0 0.0
          %677 = vmatpush1.msra.mxu0 %v589
          %678 = vmatprep.subr.mxu0 0.0
          %679 = vmatpush1.msra.mxu0 %v590
          %680 = vmatprep.subr.mxu0 0.0
          %681 = vmatpush1.msra.mxu0 %v591
          %682 = vmatprep.subr.mxu0 0.0
          %683 = vmatpush1.msra.mxu0 0.0
          %684 = vmatprep.subr.mxu0 0.0
          %685 = vmatpush1.msra.mxu0 0.0
          %686 = vmatprep.subr.mxu0 0.0
          %687 = vmatpush1.msra.mxu0 0.0
          %688 = vmatprep.subr.mxu0 0.0
          %689 = vmatpush1.msra.mxu0 0.0
          %690 = vmatprep.subr.mxu0 0.0
          %691 = vmatpush1.msra.mxu0 0.0
          %692 = vmatprep.subr.mxu0 0.0
          %693 = vmatpush1.msra.mxu0 0.0
          %694 = vmatprep.subr.mxu0 0.0
          %695 = vmatpush1.msra.mxu0 0.0
          %696 = vmatprep.subr.mxu0 0.0
          %697 = vmatpush1.msra.mxu0 0.0
          %698 = vmatprep.subr.mxu0 0.0
          %699 = vmatpush1.msra.mxu0 0.0
          %700 = vmatprep.subr.mxu0 0.0
          %701 = vmatpush1.msra.mxu0 0.0
          %702 = vmatprep.subr.mxu0 0.0
          %703 = vmatpush1.msra.mxu0 0.0
          %704 = vmatprep.subr.mxu0 0.0
          %705 = vmatpush1.msra.mxu0 0.0
          %706 = vmatprep.subr.mxu0 0.0
          %707 = vmatpush1.msra.mxu0 0.0
          %708 = vmatprep.subr.mxu0 0.0
          %709 = vmatpush1.msra.mxu0 0.0
          %710 = vmatprep.subr.mxu0 0.0
          %711 = vmatpush1.msra.mxu0 0.0
          %712 = vmatprep.subr.mxu0 0.0
          %713 = vmatpush1.msra.mxu0 0.0
          %714 = vmatprep.subr.mxu0 0.0
          %715 = vmatpush1.msra.mxu0 0.0
          %716 = vmatprep.subr.mxu0 0.0
          %717 = vmatpush1.msra.mxu0 0.0
          %718 = vmatprep.subr.mxu0 0.0
          %719 = vmatpush1.msra.mxu0 0.0
          %720 = vmatprep.subr.mxu0 0.0
          %721 = vmatpush1.msra.mxu0 0.0
          %722 = vmatprep.subr.mxu0 0.0
          %723 = vmatpush1.msra.mxu0 0.0
          %724 = vmatprep.subr.mxu0 0.0
          %725 = vmatpush1.msra.mxu0 0.0
          %726 = vmatprep.subr.mxu0 0.0
          %727 = vmatpush1.msra.mxu0 0.0
          %728 = vmatprep.subr.mxu0 0.0
          %729 = vmatpush1.msra.mxu0 0.0
          %730 = vmatprep.subr.mxu0 0.0
          %731 = vmatpush1.msra.mxu0 0.0
          %732 = vmatprep.subr.mxu0 0.0
          %733 = vmatpush1.msra.mxu0 0.0
          %734 = vmatprep.subr.mxu0 0.0
          %735 = vmatpush1.msra.mxu0 0.0
          %736 = vmatprep.subr.mxu0 0.0
          %737 = vmatpush1.msra.mxu0 0.0
          %738 = vmatprep.mubr.f32.mxu0 0.0
          %739 = vmatmul.mubr.f32.gmra.mrb[0].mxu0 %v672
          %v740 = vpop.f32.mrb[0].mxu0
          %v741 = vadd.f32 %v669, %v740
          %v742 = vpop.f32.mrb[0].mxu0
          %743 = vdwg.mxu0
          %s744 = scalar_lea.vmem %s5, 1
          %v745 = vld [vmem:[%s744] sm:$0x1]
          %v747 = vlaneseq
          %v748 = vshrl.u32 %v747, 7
          %v749 = vsub.s32 0, %v748
          %v750 = vrot.slane %v745, %v749
          %v752 = vadd.f32 %v741, %v750
          %v753 = vsub.f32 0.0, %v752
          %v754 = vmul.f32 %v753, 1.442695
          %v755 = vpow.pop %v754
          %v756 = vadd.f32 %v755, 1.0
          %v757 = vrcp.pop %v756
          %v758 = vmul.f32 1.0, %v757
          %v759 = vtanh.pop %v752
          %s760 = scalar_lea.vmem [#allocation3], 8
          %v761 = vld [vmem:[%s760] sm:$0xff]
          %763 = vrot.lane.b32.xlu0 %v761, 32
          %v764 = vpop.permute.xlu0 %763
          %v766 = vmul.f32 %v758, %v764
          %768 = vrot.lane.b32.xlu0 %v759, 64
          %v769 = vpop.permute.xlu0 %768
          %v771 = vmul.f32 %v758, %v769
          %773 = vrot.lane.b32.xlu0 %v771, 32
          %v774 = vpop.permute.xlu0 %773
          %v776 = vadd.f32 %v766, %v774
          %v777 = vtanh.pop %v776
          %779 = vrot.lane.b32.xlu0 %v777, 64
          %v780 = vpop.permute.xlu0 %779
          %v782 = vmul.f32 %v758, %v780
          %784 = vrot.lane.b32.xlu0 %v776, 96
          %v785 = vpop.permute.xlu0 %784
          %787 = vst.msk [vmem:[%s760] sm:$0xff] %vm369, %v785
          %789 = vrot.lane.b32.xlu0 %v782, 32
          %v790 = vpop.permute.xlu0 %789
          %792 = vst.msk [vmem:[%s592] sm:$0xff] %vm369, %v790
          %v793 = vstv %s378
          %vm794 = vcmp.eq.s32.totalorder %v376, %v793
          %v795 = vld [vmem:[#allocation4] sm:$0xff]
          %v796 = vsel %vm794, 1, 0
          %797 = vset.pattern.permute.xlu0 0
          %798 = vperm.xlu0 %797, %v796
          %v799 = vpop.permute.xlu0 %798
          %vm800 = vcmp.eq.s32.totalorder %v799, 1
          %802 = vrot.lane.b32.xlu0 %v795, 96
          %v803 = vpop.permute.xlu0 %802
          %v805 = vsel %vm800, %v782, %v803
          %807 = vrot.lane.b32.xlu0 %v805, 32
          %v808 = vpop.permute.xlu0 %807
          %810 = vst.msk [vmem:[#allocation4] sm:$0xff] %vm369, %v808
        $region69: #{tpu_custom_call.1} parent=51 // loop_footer
          %s382 = sadd.s32 1, %s378
        $region70: #{tpu_custom_call.1} parent=51 // loop_footer_branch
          %377 = sbr.rel target = $region66
        $region71: #{tpu_custom_call.1} parent=51 // loop_exit
          _
        %v811 = vld [vmem:[#allocation4] sm:$0xff]
        %v812 = vld [vmem:[%s6] sm:$0xff]
        %v813 = vld [vmem:[%s6 + $0x8] sm:$0xff]
        %v814 = vld [vmem:[%s6 + $0x10] sm:$0xff]
        %v815 = vld [vmem:[%s6 + $0x18] sm:$0xff]
        %v816 = vld [vmem:[%s7] sm:$0x1]
        %v818 = vlaneseq
        %v819 = vshrl.u32 %v818, 7
        %v820 = vsub.s32 0, %v819
        %v821 = vrot.slane %v816, %v820
        %v824 = vsel %vm369, %v811, 0
        %826 = vmatprep.subr.mxu0 0.0
        %827 = vmatpush1.msra.mxu0 %v812
        %828 = vmatprep.subr.mxu0 0.0
        %829 = vmatpush1.msra.mxu0 %v813
        %830 = vmatprep.subr.mxu0 0.0
        %831 = vmatpush1.msra.mxu0 %v814
        %832 = vmatprep.subr.mxu0 0.0
        %833 = vmatpush1.msra.mxu0 %v815
        %834 = vmatprep.subr.mxu0 0.0
        %835 = vmatpush1.msra.mxu0 0.0
        %836 = vmatprep.subr.mxu0 0.0
        %837 = vmatpush1.msra.mxu0 0.0
        %838 = vmatprep.subr.mxu0 0.0
        %839 = vmatpush1.msra.mxu0 0.0
        %840 = vmatprep.subr.mxu0 0.0
        %841 = vmatpush1.msra.mxu0 0.0
        %842 = vmatprep.subr.mxu0 0.0
        %843 = vmatpush1.msra.mxu0 0.0
        %844 = vmatprep.subr.mxu0 0.0
        %845 = vmatpush1.msra.mxu0 0.0
        %846 = vmatprep.subr.mxu0 0.0
        %847 = vmatpush1.msra.mxu0 0.0
        %848 = vmatprep.subr.mxu0 0.0
        %849 = vmatpush1.msra.mxu0 0.0
        %850 = vmatprep.subr.mxu0 0.0
        %851 = vmatpush1.msra.mxu0 0.0
        %852 = vmatprep.subr.mxu0 0.0
        %853 = vmatpush1.msra.mxu0 0.0
        %854 = vmatprep.subr.mxu0 0.0
        %855 = vmatpush1.msra.mxu0 0.0
        %856 = vmatprep.subr.mxu0 0.0
        %857 = vmatpush1.msra.mxu0 0.0
        %858 = vmatprep.subr.mxu0 0.0
        %859 = vmatpush1.msra.mxu0 0.0
        %860 = vmatprep.subr.mxu0 0.0
        %861 = vmatpush1.msra.mxu0 0.0
        %862 = vmatprep.subr.mxu0 0.0
        %863 = vmatpush1.msra.mxu0 0.0
        %864 = vmatprep.subr.mxu0 0.0
        %865 = vmatpush1.msra.mxu0 0.0
        %866 = vmatprep.subr.mxu0 0.0
        %867 = vmatpush1.msra.mxu0 0.0
        %868 = vmatprep.subr.mxu0 0.0
        %869 = vmatpush1.msra.mxu0 0.0
        %870 = vmatprep.subr.mxu0 0.0
        %871 = vmatpush1.msra.mxu0 0.0
        %872 = vmatprep.subr.mxu0 0.0
        %873 = vmatpush1.msra.mxu0 0.0
        %874 = vmatprep.subr.mxu0 0.0
        %875 = vmatpush1.msra.mxu0 0.0
        %876 = vmatprep.subr.mxu0 0.0
        %877 = vmatpush1.msra.mxu0 0.0
        %878 = vmatprep.subr.mxu0 0.0
        %879 = vmatpush1.msra.mxu0 0.0
        %880 = vmatprep.subr.mxu0 0.0
        %881 = vmatpush1.msra.mxu0 0.0
        %882 = vmatprep.subr.mxu0 0.0
        %883 = vmatpush1.msra.mxu0 0.0
        %884 = vmatprep.subr.mxu0 0.0
        %885 = vmatpush1.msra.mxu0 0.0
        %886 = vmatprep.subr.mxu0 0.0
        %887 = vmatpush1.msra.mxu0 0.0
        %888 = vmatprep.subr.mxu0 0.0
        %889 = vmatpush1.msra.mxu0 0.0
        %890 = vmatprep.mubr.f32.mxu0 0.0
        %891 = vmatmul.mubr.f32.gmra.mrb[0].mxu0 %v824
        %v892 = vpop.f32.mrb[0].mxu0
        %v893 = vadd.f32 %v821, %v892
        %v894 = vpop.f32.mrb[0].mxu0
        %895 = vdwg.mxu0
        %vm896 = vcmask 64512
        %897 = vst.msk [vmem:[%s368] sm:$0xff] %vm896, %v893
        %p898 = scmp.lt.s32.totalorder %s23, 1
        %s899 = scalar_select %p898, %s23, 1
        %s900 = smul.addr %s899, 8
        %s901 = scalar_lea.vmem %s8, %s900
        // Predicated region
        $region72: #{tpu_custom_call.1} parent=51 // pred_check
          %p902 = pneg %p219
        $region73: #{tpu_custom_call.1} parent=51 // pred_check_branch
          %904 = sbr.rel (%p902) target = $region75
        $region74: #{tpu_custom_call.1} parent=51 // pred_region
          _
        $region75: #{tpu_custom_call.1} parent=51 // pred_fallthru
          _
      $region52: #{tpu_custom_call.1} parent=5 // pred_fallthru
        _
      %p905 = scmp.le.s32.totalorder 2, %s18
      // Predicated region
      $region76: #{tpu_custom_call.1} parent=5 // pred_check
        %p906 = pneg %p905
      $region77: #{tpu_custom_call.1} parent=5 // pred_check_branch
        %908 = sbr.rel (%p906) target = $region79
      $region78: #{tpu_custom_call.1} parent=5 // pred_region
        %s909 = ssub.s32 %s18, 2
        // Predicated region
        $region80: #{tpu_custom_call.1} parent=78 // pred_check
          %p910 = pneg %p225
        $region81: #{tpu_custom_call.1} parent=78 // pred_check_branch
          %912 = sbr.rel (%p910) target = $region83
        $region82: #{tpu_custom_call.1} parent=78 // pred_region
          %p913 = scmp.lt.s32.totalorder %s24, 1
          %s914 = scalar_select %p913, %s24, 1
          %s915 = smul.addr %s914, 8
          %s916 = scalar_lea.vmem %s8, %s915
        $region83: #{tpu_custom_call.1} parent=78 // pred_fallthru
          _
      $region79: #{tpu_custom_call.1} parent=5 // pred_fallthru
        _
    $region6: #{tpu_custom_call.1} parent=1 // loop_footer
      %s22 = sadd.s32 1, %s18
    $region7: #{tpu_custom_call.1} parent=1 // loop_footer_branch
      %17 = sbr.rel target = $region3
    $region8: #{tpu_custom_call.1} parent=1 // loop_exit
      _
    %917 = vsyncpa [#allocation6], 1
    %s918 = scalar_lea.sflag [#allocation6], 1
    %919 = vsyncpa %s918, 1
    %920 = vsyncpa [#allocation8], 1

</llo_original>
